<compile_context>
chip_gen: v5e
topology: v5e:2x2
jax: 0.10.0
libtpu: 0.0.40
codegen_flags: <defaults>
</compile_context>

<pallas_src>
import jax
import jax.numpy as jnp
from jax.experimental import pallas as pl
from jax.experimental.pallas import tpu as pltpu


# ---------------------------------------------------------------------------
# Scalar path: 0-d input, routed through SMEM (scalar unit only).
# ---------------------------------------------------------------------------
def _add_one_scalar_kernel(x_ref, o_ref):
    # Pure scalar path: sld + sadd + sst; no vregs, no vector slots touched.
    o_ref[0] = x_ref[0] + 1.0


_scalar_add_one = pl.pallas_call(
    _add_one_scalar_kernel,
    out_shape=jax.ShapeDtypeStruct((1,), jnp.float32),
    in_specs=[pl.BlockSpec(memory_space=pltpu.MemorySpace.SMEM)],
    out_specs=pl.BlockSpec(memory_space=pltpu.MemorySpace.SMEM),
    input_output_aliases={0: 0},
)


def _add_one_scalar(x):
    # Lift 0-d -> (1,) for the SMEM ref, then squeeze back to 0-d.
    return _scalar_add_one(x.reshape(1)).reshape(())


# ---------------------------------------------------------------------------
# Shared elementwise kernel body (VPU add over whatever tile it is given).
# ---------------------------------------------------------------------------
def _add_one_block_kernel(x_ref, o_ref):
    o_ref[...] = x_ref[...] + jnp.float32(1.0)


# ---------------------------------------------------------------------------
# Small-tensor path: one full-array block (bypasses the (8,128) rule),
# no grid, no padding, no reshapes.
# ---------------------------------------------------------------------------
_SMALL_MAX_ELEMS = 1 << 20  # 4 MiB f32; in+out = 8 MiB VMEM, fits all gens


def _add_one_small(x):
    return pl.pallas_call(
        _add_one_block_kernel,
        out_shape=jax.ShapeDtypeStruct(x.shape, x.dtype),
        input_output_aliases={0: 0},
    )(x)


# ---------------------------------------------------------------------------
# Tiled path: large tensors.  Lane-dense (rows, 512) view, grid over row
# tiles of 1024 rows (2 MiB/tile).  The final grid step may be a partial
# row-tile (masked writes) -- no rounding rows up to the tile size.
# ---------------------------------------------------------------------------
_LANES = 512          # multiple of 128 -> unmasked vst on full tiles
_ROWS_PER_TILE = 1024  # (1024, 512) f32 tile = 2 MiB


def _add_one_tiled(x):
    orig_shape = x.shape
    n = x.size
    flat = x.reshape(-1)

    pad = (-n) % _LANES
    if pad:
        # Only the last partial 512-lane row is padded (<2 KiB of zeros).
        # Lane-aligned inputs (the common case) skip this copy entirely.
        flat = jnp.pad(flat, (0, pad))
    rows = (n + pad) // _LANES
    x2d = flat.reshape(rows, _LANES)  # contiguous reshape: no data movement

    out = pl.pallas_call(
        _add_one_block_kernel,
        out_shape=jax.ShapeDtypeStruct((rows, _LANES), jnp.float32),
        grid=(pl.cdiv(rows, _ROWS_PER_TILE),),
        in_specs=[pl.BlockSpec((_ROWS_PER_TILE, _LANES), lambda i: (i, 0))],
        out_specs=pl.BlockSpec((_ROWS_PER_TILE, _LANES), lambda i: (i, 0)),
        input_output_aliases={0: 0},
        compiler_params=pltpu.CompilerParams(
            dimension_semantics=("parallel",)
        ),
    )(x2d)

    if pad:
        return out.reshape(-1)[:n].reshape(orig_shape)
    return out.reshape(orig_shape)


# ---------------------------------------------------------------------------
# Public wrapper matching Module.forward: output = input + 1
# ---------------------------------------------------------------------------
def add_one(x):
    x = jnp.asarray(x, jnp.float32)
    if x.ndim == 0:
        return _add_one_scalar(x)
    if x.size == 0:
        return x  # degenerate: nothing to compute
    if x.size <= _SMALL_MAX_ELEMS:
        return _add_one_small(x)
    return _add_one_tiled(x)


if __name__ == "__main__":
    key = jax.random.PRNGKey(0)

    # Exact input from the PyTorch spec: x = torch.tensor(1.0)
    x = jnp.float32(1.0)
    y = jax.block_until_ready(add_one(x))
    assert y.shape == ()
    assert y.dtype == jnp.float32
    assert float(y) == 2.0

    # Random scalar sanity check (scalar / SMEM path).
    xr = jax.random.normal(key, (), dtype=jnp.float32)
    yr = jax.block_until_ready(add_one(xr))
    assert jnp.allclose(yr, xr + 1.0)

    # Small-tensor sanity check (single full-array block path).
    xt = jax.random.normal(key, (2, 4, 16, 16), dtype=jnp.float32)
    yt = jax.block_until_ready(add_one(xt))
    assert yt.shape == xt.shape
    assert jnp.allclose(yt, xt + 1.0)

    # Larger-tensor sanity check (lane-dense tiled path, zero-copy reshape,
    # grid of 4 steps -> both TCs get work on v7x).
    xl = jax.random.normal(key, (2048, 1024), dtype=jnp.float32)
    yl = jax.block_until_ready(add_one(xl))
    assert yl.shape == xl.shape
    assert jnp.allclose(yl, xl + 1.0)

    print("KERNEL_OK")
</pallas_src>

<mosaic_0001>
module attributes {stable_mosaic.version = 11 : i64} {
  func.func @_add_one_scalar_kernel(%arg0: memref<1xf32, #tpu.memory_space<smem>>, %arg1: memref<1xf32, #tpu.memory_space<smem>>) attributes {dimension_semantics = [], scalar_prefetch = 0 : i64, scratch_operands = 0 : i64, tpu.core_type = #tpu.core_type<tc>} {
    %c0 = arith.constant 0 : index
    %0 = memref.load %arg0[%c0] : memref<1xf32, #tpu.memory_space<smem>>
    %cst = arith.constant 1.000000e+00 : f32
    %1 = arith.addf %0, %cst : f32
    %c0_0 = arith.constant 0 : index
    %2 = memref.load %arg1[%c0_0] : memref<1xf32, #tpu.memory_space<smem>>
    memref.store %1, %arg1[%c0_0] : memref<1xf32, #tpu.memory_space<smem>>
    return
  }
}

</mosaic_0001>

<llo_original>
// kernel: tpu_custom_call.1
$region0: #{tpu_custom_call.1}
  #allocation0 [shape = 'u32[]', space=smem, size = 0x4, offset = 0x4, fixed_abs, tag = 'smem constant byte address 0x4 - core index']
  #allocation1 [shape = 'u32[72,128]{1,0:T(1,128)}', space=vmem, size = 0x9000, scoped, tag = 'internal scratch']
  #allocation2 [shape = 'f32[1]{0:T(128)S(6)}', space=smem, size = 0x200, scoped, tag = 'scoped memory for tpu_custom_call.1']
  %s0 = inlined_call_operand.<no memory space> [shape: f32[1], index: 0, kind: input, shape index: {}, may-alias: {0,1}]
  %s1 = inlined_call_operand.hbm [shape: f32[1], index: 1, kind: output, shape index: {}, may-alias: {0,1}]
  %s2 = sld [smem:[#allocation0]]
  $region14: #{tpu_custom_call.1} parent=0
    _
  %s4 = ssub.s32 1, %s2
  %s5 = scalar_select 0, %s4, %s2
  %6 = sst [smem:[#allocation2]] %s0
  $region1: #{tpu_custom_call.1} parent=0
    #allocation3 [shape = 'u8[512]{0}', space=smem, size = 0x200, scoped, tag = 'output window, operand 0, single buffered']
    #allocation4 [shape = 's32[1]{0}', space=sflag, size = 0x4, scoped, tag = 'scoped memory for tpu_custom_call.1']
    %7 = vsyncpa [#allocation4], 0
    // Predicated region
    $region2: #{tpu_custom_call.1} parent=1 // pred_check
      _
    $region3: #{tpu_custom_call.1} parent=1 // pred_check_branch
      %9 = sbr.rel (0) target = $region5
    $region4: #{tpu_custom_call.1} parent=1 // pred_region
      _
    $region5: #{tpu_custom_call.1} parent=1 // pred_fallthru
      _
    %s10 = sld [smem:[#allocation2]]
    %s11 = sadd.f32 %s10, 1.0
    %s12 = scalar_lea.smem [#allocation3], 0
    %13 = sst [smem:[%s12]] %s11
    // Predicated region
    $region6: #{tpu_custom_call.1} parent=1 // pred_check
      _
    $region7: #{tpu_custom_call.1} parent=1 // pred_check_branch
      %15 = sbr.rel (0) target = $region9
    $region8: #{tpu_custom_call.1} parent=1 // pred_region
      %17 = vsyncadd [#allocation4], 0
      %s19 = sshll.u32 %s1, 4
      %s20 = int_to_ptr.hbm [resolvable:$true] %s19
      %22 = dma.smem_to_hbm [#allocation3], 16, %s20, [#allocation4]
    $region9: #{tpu_custom_call.1} parent=1 // pred_fallthru
      _
    // Predicated region
    $region10: #{tpu_custom_call.1} parent=1 // pred_check
      _
    $region11: #{tpu_custom_call.1} parent=1 // pred_check_branch
      %24 = sbr.rel (0) target = $region13
    $region12: #{tpu_custom_call.1} parent=1 // pred_region
      %26 = dma.done [#allocation4], 16
    $region13: #{tpu_custom_call.1} parent=1 // pred_fallthru
      _
    %27 = sfence
    %28 = vsyncpa [#allocation4], 1

</llo_original>
